<compile_context>
chip_gen: v6e
topology: v6e:2x2x1
jax: 0.10.0
libtpu: 0.0.40
codegen_flags: <defaults>
</compile_context>

<pallas_src>
import functools

import jax
import jax.numpy as jnp
from jax import lax
from jax.experimental import pallas as pl
from jax.experimental.pallas import tpu as pltpu


def _cam_kernel(feat_ref, w_ref, b_ref, out_ref):
    # feat: (TB, D), w: (D, 7), b: (1, 7)  [scale_bias already folded in b[0,0]]
    feat = feat_ref[...]
    w = w_ref[...]
    b = b_ref[...]

    # Fused matmul for all three heads (MXU), f32 accumulation.
    y = jnp.dot(feat, w, preferred_element_type=jnp.float32) + b  # (TB, 7)

    # Column ids: 0 -> scale, 1..2 -> trans, 3..6 -> quat.
    col = lax.broadcasted_iota(jnp.int32, y.shape, dimension=1)

    # ScalePredictor: relu(linear + scale_bias) + 1e-12 (bias folded on host).
    scale_out = jnp.maximum(y, 0.0) + 1e-12

    # QuatPredictor: F.normalize(quat, p=2, dim=1, eps=1e-12)
    # clamp(norm, eps) == sqrt(clamp(norm^2, eps^2)); one EUP rsqrt.
    quat_mask = col >= 3
    quat_sq = jnp.where(quat_mask, y * y, 0.0)
    inv_norm = lax.rsqrt(jnp.maximum(jnp.sum(quat_sq, axis=1, keepdims=True), 1e-24))
    quat_out = y * inv_norm

    # TransPredictor: identity.
    out = jnp.where(col == 0, scale_out, jnp.where(col <= 2, y, quat_out))
    out_ref[...] = out.astype(out_ref.dtype)


def _round_up(x, m):
    return ((x + m - 1) // m) * m


def _pick_block_rows(B, D, feat_budget_bytes=8 * 1024 * 1024):
    """Rows per tile: multiple of 8, double-buffered feat tiles <= budget."""
    tb = feat_budget_bytes // max(1, 2 * D * 4)  # 2 buffers x TB x D x 4B
    tb = max(8, min(1024, tb))
    tb = (tb // 8) * 8
    tb = min(tb, _round_up(B, 8))  # don't over-allocate for tiny batches
    return max(tb, 8)


def cam_predictor_forward(feat, w, b, *, scale_bias=0.75, block_rows=None):
    """feat: (B, nz_feat), w: (nz_feat, 7), b: (7,) -> (B, 7)."""
    B, D = feat.shape
    feat = feat.astype(jnp.float32)
    # Fold the ScalePredictor bias into the fused bias (host-side, trace time).
    b2d = b.astype(jnp.float32).reshape(1, 7).at[0, 0].add(scale_bias)
    w = w.astype(jnp.float32)

    tb = block_rows if block_rows is not None else _pick_block_rows(B, D)
    grid = (pl.cdiv(B, tb),)

    cost = pl.CostEstimate(
        flops=2 * B * D * 7,
        transcendentals=B,  # one rsqrt per row
        bytes_accessed=4 * (B * D + D * 7 + B * 7),
    )

    return pl.pallas_call(
        _cam_kernel,
        out_shape=jax.ShapeDtypeStruct((B, 7), jnp.float32),
        grid=grid,
        in_specs=[
            pl.BlockSpec((tb, D), lambda i: (i, 0)),   # feat tile (pipelined)
            pl.BlockSpec((D, 7), lambda i: (0, 0)),    # W resident across grid
            pl.BlockSpec((1, 7), lambda i: (0, 0)),    # fused bias resident
        ],
        out_specs=pl.BlockSpec((tb, 7), lambda i: (i, 0)),
        compiler_params=pltpu.CompilerParams(
            dimension_semantics=("parallel",),  # shard batch tiles across TCs (v7x)
        ),
        cost_estimate=cost,
    )(feat, w, b2d)


def init_params(key, nz_feat):
    """Deterministic synthetic init for the three heads, fused as (nz_feat, 7)."""
    k_sw, k_sb, k_tw, k_tb, k_qw, k_qb = jax.random.split(key, 6)
    bound = 1.0 / jnp.sqrt(nz_feat)
    # PyTorch Linear default: U(-1/sqrt(in), 1/sqrt(in)) for weight and bias.
    w_scale = jax.random.uniform(k_sw, (nz_feat, 1), jnp.float32, -bound, bound)
    b_scale = jax.random.uniform(k_sb, (1,), jnp.float32, -bound, bound)
    w_trans = jax.random.uniform(k_tw, (nz_feat, 2), jnp.float32, -bound, bound)
    b_trans = jax.random.uniform(k_tb, (2,), jnp.float32, -bound, bound)
    w_quat = jax.random.uniform(k_qw, (nz_feat, 4), jnp.float32, -bound, bound)
    b_quat = jax.random.uniform(k_qb, (4,), jnp.float32, -bound, bound)
    w = jnp.concatenate([w_scale, w_trans, w_quat], axis=1)  # (nz_feat, 7)
    b = jnp.concatenate([b_scale, b_trans, b_quat], axis=0)  # (7,)
    return w, b


def reference_forward(feat, w, b, *, scale_bias=0.75):
    y = feat @ w + b
    scale = jnp.maximum(y[:, 0:1] + scale_bias, 0.0) + 1e-12
    trans = y[:, 1:3]
    quat = y[:, 3:7]
    nrm = jnp.maximum(jnp.linalg.norm(quat, axis=1, keepdims=True), 1e-12)
    return jnp.concatenate([scale, trans, quat / nrm], axis=1)


if __name__ == "__main__":
    key = jax.random.PRNGKey(0)
    k_feat, k_params = jax.random.split(key)

    batch, nz_feat = 2, 32
    feat = jax.random.normal(k_feat, (batch, nz_feat), jnp.float32)
    w, b = init_params(k_params, nz_feat)

    out = cam_predictor_forward(feat, w, b, scale_bias=0.75)
    out = jax.block_until_ready(out)

    ref = reference_forward(feat, w, b, scale_bias=0.75)
    assert out.shape == (batch, 7)
    assert jnp.allclose(out, ref, atol=1e-5, rtol=1e-5)

    # Also exercise a multi-tile grid (B not a multiple of the tile size).
    batch2 = 300
    feat2 = jax.random.normal(jax.random.PRNGKey(1), (batch2, nz_feat), jnp.float32)
    out2 = jax.block_until_ready(
        cam_predictor_forward(feat2, w, b, scale_bias=0.75, block_rows=128)
    )
    ref2 = reference_forward(feat2, w, b, scale_bias=0.75)
    assert out2.shape == (batch2, 7)
    assert jnp.allclose(out2, ref2, atol=1e-5, rtol=1e-5)

    print("KERNEL_OK")
</pallas_src>

<mosaic_0001>
module attributes {stable_mosaic.version = 11 : i64} {
  func.func @_cam_kernel(%arg0: i32, %arg1: memref<8x32xf32, #tpu.memory_space<vmem>>, %arg2: memref<32x7xf32, #tpu.memory_space<vmem>>, %arg3: memref<1x7xf32, #tpu.memory_space<vmem>>, %arg4: memref<8x7xf32, #tpu.memory_space<vmem>>) attributes {dimension_semantics = [#tpu.dimension_semantics<parallel>], iteration_bounds = array<i64: 1>, scalar_prefetch = 0 : i64, scratch_operands = 0 : i64, tpu.core_type = #tpu.core_type<tc>, window_params = [{transform_indices = @transform_0, window_bounds = array<i64: 8, 32>}, {pipeline_mode = #tpu.pipeline_mode<synchronous>, transform_indices = @transform_1, window_bounds = array<i64: 32, 7>}, {pipeline_mode = #tpu.pipeline_mode<synchronous>, transform_indices = @transform_2, window_bounds = array<i64: 1, 7>}, {transform_indices = @transform_3, window_bounds = array<i64: 8, 7>}]} {
    %c0 = arith.constant 0 : index
    %c0_0 = arith.constant 0 : index
    %0 = vector.load %arg1[%c0, %c0_0] : memref<8x32xf32, #tpu.memory_space<vmem>>, vector<8x32xf32>
    %c0_1 = arith.constant 0 : index
    %c0_2 = arith.constant 0 : index
    %1 = vector.load %arg2[%c0_1, %c0_2] : memref<32x7xf32, #tpu.memory_space<vmem>>, vector<32x7xf32>
    %c0_3 = arith.constant 0 : index
    %c0_4 = arith.constant 0 : index
    %2 = vector.load %arg3[%c0_3, %c0_4] : memref<1x7xf32, #tpu.memory_space<vmem>>, vector<1x7xf32>
    %cst = arith.constant dense<0.000000e+00> : vector<8x7xf32>
    %3 = tpu.matmul %0, %1, %cst {dimension_numbers = #tpu.dot_dimension_numbers<[1], [0], [0], [1], [0, 0, 1, 1], [], []>} : vector<8x32xf32>, vector<32x7xf32>, vector<8x7xf32> -> vector<8x7xf32>
    %4 = vector.broadcast %2 : vector<1x7xf32> to vector<8x7xf32>
    %5 = arith.addf %3, %4 : vector<8x7xf32>
    %6 = tpu.iota {dimensions = array<i32: 1>} : vector<8x7xi32>
    %cst_5 = arith.constant 0.000000e+00 : f32
    %7 = vector.broadcast %cst_5 : f32 to vector<8x7xf32>
    %8 = arith.maximumf %5, %7 : vector<8x7xf32>
    %cst_6 = arith.constant 9.99999996E-13 : f32
    %9 = vector.broadcast %cst_6 : f32 to vector<8x7xf32>
    %10 = arith.addf %8, %9 : vector<8x7xf32>
    %c3_i32 = arith.constant 3 : i32
    %11 = vector.broadcast %c3_i32 : i32 to vector<8x7xi32>
    %12 = arith.cmpi sge, %6, %11 : vector<8x7xi32>
    %13 = arith.mulf %5, %5 : vector<8x7xf32>
    %cst_7 = arith.constant 0.000000e+00 : f32
    %14 = vector.broadcast %cst_7 : f32 to vector<8x7xf32>
    %15 = arith.select %12, %13, %14 : vector<8x7xi1>, vector<8x7xf32>
    %cst_8 = arith.constant dense<0.000000e+00> : vector<8xf32>
    %16 = vector.multi_reduction <add>, %15, %cst_8 [1] : vector<8x7xf32> to vector<8xf32>
    %17 = vector.shape_cast %16 : vector<8xf32> to vector<8x1xf32>
    %cst_9 = arith.constant 1.000000e-24 : f32
    %18 = vector.broadcast %cst_9 : f32 to vector<8x1xf32>
    %19 = arith.maximumf %17, %18 : vector<8x1xf32>
    %20 = math.rsqrt %19 : vector<8x1xf32>
    %21 = vector.broadcast %20 : vector<8x1xf32> to vector<8x7xf32>
    %22 = arith.mulf %5, %21 : vector<8x7xf32>
    %c0_i32 = arith.constant 0 : i32
    %23 = vector.broadcast %c0_i32 : i32 to vector<8x7xi32>
    %24 = arith.cmpi eq, %6, %23 : vector<8x7xi32>
    %c2_i32 = arith.constant 2 : i32
    %25 = vector.broadcast %c2_i32 : i32 to vector<8x7xi32>
    %26 = arith.cmpi sle, %6, %25 : vector<8x7xi32>
    %27 = arith.select %26, %5, %22 : vector<8x7xi1>, vector<8x7xf32>
    %28 = arith.select %24, %10, %27 : vector<8x7xi1>, vector<8x7xf32>
    %c0_10 = arith.constant 0 : index
    %c0_11 = arith.constant 0 : index
    %29 = vector.load %arg4[%c0_10, %c0_11] : memref<8x7xf32, #tpu.memory_space<vmem>>, vector<8x7xf32>
    tpu.vector_store %arg4[%c0_10, %c0_11], %28 {strides = array<i32>} : memref<8x7xf32, #tpu.memory_space<vmem>>, vector<8x7xf32>,
    return
  }
  func.func @transform_0(%arg0: i32) -> (i32, i32) {
    %c0_i32 = arith.constant 0 : i32
    %c0_i32_0 = arith.constant 0 : i32
    return %arg0, %c0_i32 : i32, i32
  }
  func.func @transform_1(%arg0: i32) -> (i32, i32) {
    %c0_i32 = arith.constant 0 : i32
    %c0_i32_0 = arith.constant 0 : i32
    %c0_i32_1 = arith.constant 0 : i32
    return %c0_i32, %c0_i32_0 : i32, i32
  }
  func.func @transform_2(%arg0: i32) -> (i32, i32) {
    %c0_i32 = arith.constant 0 : i32
    %c0_i32_0 = arith.constant 0 : i32
    %c0_i32_1 = arith.constant 0 : i32
    return %c0_i32, %c0_i32_0 : i32, i32
  }
  func.func @transform_3(%arg0: i32) -> (i32, i32) {
    %c0_i32 = arith.constant 0 : i32
    %c0_i32_0 = arith.constant 0 : i32
    return %arg0, %c0_i32 : i32, i32
  }
}

</mosaic_0001>

<llo_original>
// kernel: tpu_custom_call.1
$region0: #{tpu_custom_call.1}
  #allocation0 [shape = 'u32[]', space=smem, size = 0x4, offset = 0x4, fixed_abs, tag = 'smem constant byte address 0x4 - core index']
  #allocation1 [shape = 'u32[144,128]{1,0:T(1,128)}', space=vmem, size = 0x12000, scoped, tag = 'internal scratch']
  %s0 = inlined_call_operand.vmem [shape: f32[2,32], index: 0, kind: input, shape index: {}]
  %s1 = inlined_call_operand.vmem [shape: f32[32,7], index: 1, kind: input, shape index: {}]
  %s2 = inlined_call_operand.vmem [shape: f32[1,7], index: 2, kind: input, shape index: {}]
  %s3 = inlined_call_operand.hbm [shape: f32[2,7], index: 3, kind: output, shape index: {}]
  %s4 = sld [smem:[#allocation0]]
  $region22: #{tpu_custom_call.1} parent=0
    _
  %s6 = ssub.s32 1, %s4
  %s7 = scalar_select 0, %s6, %s4
  $region1: #{tpu_custom_call.1} parent=0
    #allocation2 [shape = 'u8[4096]{0}', space=vmem, size = 0x1000, scoped, tag = 'output window, operand 0, single buffered']
    #allocation3 [shape = 's32[1]{0}', space=sflag, size = 0x4, scoped, tag = 'scoped memory for tpu_custom_call.1']
    %8 = vsyncpa [#allocation3], 0
    // Predicated region
    $region2: #{tpu_custom_call.1} parent=1 // pred_check
      _
    $region3: #{tpu_custom_call.1} parent=1 // pred_check_branch
      %10 = sbr.rel (0) target = $region5
    $region4: #{tpu_custom_call.1} parent=1 // pred_region
      _
    $region5: #{tpu_custom_call.1} parent=1 // pred_fallthru
      _
    // Predicated region
    $region6: #{tpu_custom_call.1} parent=1 // pred_check
      _
    $region7: #{tpu_custom_call.1} parent=1 // pred_check_branch
      %12 = sbr.rel (0) target = $region9
    $region8: #{tpu_custom_call.1} parent=1 // pred_region
      _
    $region9: #{tpu_custom_call.1} parent=1 // pred_fallthru
      _
    // Predicated region
    $region10: #{tpu_custom_call.1} parent=1 // pred_check
      _
    $region11: #{tpu_custom_call.1} parent=1 // pred_check_branch
      %14 = sbr.rel (0) target = $region13
    $region12: #{tpu_custom_call.1} parent=1 // pred_region
      _
    $region13: #{tpu_custom_call.1} parent=1 // pred_fallthru
      _
    %v15 = vld [vmem:[%s0] sm:$0xff]
    %v16 = vld [vmem:[%s1] sm:$0xff]
    %v17 = vld [vmem:[%s1 + $0x8] sm:$0xff]
    %v18 = vld [vmem:[%s1 + $0x10] sm:$0xff]
    %v19 = vld [vmem:[%s1 + $0x18] sm:$0xff]
    %v20 = vld [vmem:[%s2] sm:$0x1]
    %v22 = vlaneseq
    %v23 = vshrl.u32 %v22, 7
    %v24 = vsub.s32 0, %v23
    %v25 = vrot.slane %v20, %v24
    %vm27 = vcmask 261120
    %v29 = vsel %vm27, %v15, 0
    %31 = vmatprep.subr.mxu0 0.0
    %32 = vmatpush1.msra.mxu0 0.0
    %33 = vmatprep.subr.mxu0 0.0
    %34 = vmatpush1.msra.mxu0 0.0
    %35 = vmatprep.subr.mxu0 0.0
    %36 = vmatpush1.msra.mxu0 0.0
    %37 = vmatprep.subr.mxu0 0.0
    %38 = vmatpush1.msra.mxu0 0.0
    %39 = vmatprep.subr.mxu0 0.0
    %40 = vmatpush1.msra.mxu0 0.0
    %41 = vmatprep.subr.mxu0 0.0
    %42 = vmatpush1.msra.mxu0 0.0
    %43 = vmatprep.subr.mxu0 0.0
    %44 = vmatpush1.msra.mxu0 0.0
    %45 = vmatprep.subr.mxu0 0.0
    %46 = vmatpush1.msra.mxu0 0.0
    %47 = vmatprep.subr.mxu0 0.0
    %48 = vmatpush1.msra.mxu0 0.0
    %49 = vmatprep.subr.mxu0 0.0
    %50 = vmatpush1.msra.mxu0 0.0
    %51 = vmatprep.subr.mxu0 0.0
    %52 = vmatpush1.msra.mxu0 0.0
    %53 = vmatprep.subr.mxu0 0.0
    %54 = vmatpush1.msra.mxu0 0.0
    %55 = vmatprep.subr.mxu0 0.0
    %56 = vmatpush1.msra.mxu0 %v19
    %57 = vmatprep.subr.mxu0 0.0
    %58 = vmatpush1.msra.mxu0 %v18
    %59 = vmatprep.subr.mxu0 0.0
    %60 = vmatpush1.msra.mxu0 %v17
    %61 = vmatprep.subr.mxu0 0.0
    %62 = vmatpush1.msra.mxu0 %v16
    %63 = vmatprep.subr.mxu0 0.0
    %64 = vmatpush2.msra.mxu0 0.0
    %65 = vmatprep.subr.mxu0 0.0
    %66 = vmatpush2.msra.mxu0 0.0
    %67 = vmatprep.subr.mxu0 0.0
    %68 = vmatpush2.msra.mxu0 0.0
    %69 = vmatprep.subr.mxu0 0.0
    %70 = vmatpush2.msra.mxu0 0.0
    %71 = vmatprep.subr.mxu0 0.0
    %72 = vmatpush2.msra.mxu0 0.0
    %73 = vmatprep.subr.mxu0 0.0
    %74 = vmatpush2.msra.mxu0 0.0
    %75 = vmatprep.subr.mxu0 0.0
    %76 = vmatpush2.msra.mxu0 0.0
    %77 = vmatprep.subr.mxu0 0.0
    %78 = vmatpush2.msra.mxu0 0.0
    %79 = vmatprep.subr.mxu0 0.0
    %80 = vmatpush2.msra.mxu0 0.0
    %81 = vmatprep.subr.mxu0 0.0
    %82 = vmatpush2.msra.mxu0 0.0
    %83 = vmatprep.subr.mxu0 0.0
    %84 = vmatpush2.msra.mxu0 0.0
    %85 = vmatprep.subr.mxu0 0.0
    %86 = vmatpush2.msra.mxu0 0.0
    %87 = vmatprep.subr.mxu0 0.0
    %88 = vmatpush2.msra.mxu0 0.0
    %89 = vmatprep.subr.mxu0 0.0
    %90 = vmatpush2.msra.mxu0 0.0
    %91 = vmatprep.subr.mxu0 0.0
    %92 = vmatpush2.msra.mxu0 0.0
    %93 = vmatprep.subr.mxu0 0.0
    %94 = vmatpush2.msra.mxu0 0.0
    %95 = vmatprep.mubr.f32.mxu0 0.0
    %96 = vmatmul.mubr.f32.gmra.mxu0 %v29
    %v97 = vpop.f32.mrf.mxu0
    %v98 = vadd.f32 %v25, %v97
    %v99 = vpop.f32.mrf.mxu0
    %100 = vdwg.mxu0
    %v101 = vlaneseq
    %v102 = vand.u32 %v101, 127
    %v103 = vmax.f32 %v98, 0.0
    %v104 = vadd.f32 %v103, 1e-12
    %vm105 = vcmp.ge.s32.totalorder %v102, 3
    %v106 = vmul.f32 %v98, %v98
    %v107 = vsel %vm105, %v106, 0.0
    %vm108 = vcmask 56320
    %v109 = vsel %vm108, %v107, 0.0
    %110 = vadd.xlane.f32.xlu0 %v109
    %v111 = vpop.xlane.xlu0 %110
    %v112 = vmax.f32 %v111, 1e-24
    %v113 = vrsqrt.pop %v112
    %v114 = vmul.f32 %v98, %v113
    %vm115 = vcmp.eq.s32.totalorder %v102, 0
    %vm116 = vcmp.le.s32.totalorder %v102, 2
    %v117 = vsel %vm116, %v98, %v114
    %v118 = vsel %vm115, %v104, %v117
    %119 = vst.msk [vmem:[#allocation2] sm:$0xff] %vm108, %v118
    // Predicated region
    $region14: #{tpu_custom_call.1} parent=1 // pred_check
      _
    $region15: #{tpu_custom_call.1} parent=1 // pred_check_branch
      %121 = sbr.rel (0) target = $region17
    $region16: #{tpu_custom_call.1} parent=1 // pred_region
      %s123 = ssub.s32 128, 32
      %124 = vsyncadd [#allocation3], %s123
      %s125 = sshll.u32 [#allocation2], 4
      %s126 = int_to_ptr.vmem [resolvable:$true] %s125
      %131 = dma.vmem_to_hbm [thread:$0]  %s126, 32, %s3, [#allocation3], 32, 32, 2
    $region17: #{tpu_custom_call.1} parent=1 // pred_fallthru
      _
    // Predicated region
    $region18: #{tpu_custom_call.1} parent=1 // pred_check
      _
    $region19: #{tpu_custom_call.1} parent=1 // pred_check_branch
      %133 = sbr.rel (0) target = $region21
    $region20: #{tpu_custom_call.1} parent=1 // pred_region
      %134 = dma.done [#allocation3], 128
    $region21: #{tpu_custom_call.1} parent=1 // pred_fallthru
      _
    %135 = vsyncpa [#allocation3], 1

</llo_original>
